<compile_context>
chip_gen: v7x
topology: tpu7x:2x2x1
jax: 0.10.0
libtpu: 0.0.40
codegen_flags: <defaults>
</compile_context>

<pallas_src>
import jax
import jax.numpy as jnp
from jax.experimental import pallas as pl
from jax.experimental.pallas import tpu as pltpu

EPSILON_MARGIN = 1e-16
SOFT_PLUS_BETA = 20.0


def lower_bounded(p):
    """JAX equivalent of lower_bounded_tensor: softplus(p, beta=20) + eps."""
    return jax.nn.softplus(SOFT_PLUS_BETA * p) / SOFT_PLUS_BETA + EPSILON_MARGIN


def _cdiv(a, b):
    return -(-a // b)


def _round_up(v, m):
    return _cdiv(v, m) * m


def _pick_tile(dim, cap, align):
    """Full-dim tile when it fits (no padding / no ragged edge); otherwise a
    near-divisor, `align`-multiple tile <= cap to minimize wasted rows/lanes."""
    if dim <= cap:
        return dim
    ntiles = _cdiv(dim, cap)
    return min(_round_up(_cdiv(dim, ntiles), align), cap)


def _product_rbf_kernel(logamp_ref,        # SMEM: (ny,)  log((s1*s2)^2)
                        x_ref,             # VMEM: (1, TN, K) augmented, weighted X tile
                        y_ref,             # VMEM: (1, TM, K) augmented, weighted Y tile
                        o_ref):            # VMEM: (1, TN, TM) output tile
    o = pl.program_id(2)                   # output-dimension index (always last grid axis)

    lhs = x_ref[0]                         # (TN, K)
    rhs = y_ref[0]                         # (TM, K)

    # Single MXU contraction produces the full exponent:
    #   e[n,m] = xw.yw - 0.5||xw||^2 - 0.5||yw||^2 + log(amp)
    #          = log(amp) - 0.5 * ||xw - yw||^2
    e = jax.lax.dot_general(
        lhs, rhs,
        dimension_numbers=(((1,), (1,)), ((), ())),
        preferred_element_type=jnp.float32,
        precision=jax.lax.Precision.HIGHEST)           # (TN, TM)

    # Clamp: the norm-expansion can round slightly positive past log(amp) for
    # near-duplicate points (equivalent to the old max(d, 0) clamp).
    e = jnp.minimum(e, logamp_ref[o])

    o_ref[0, :, :] = jnp.exp(e).astype(o_ref.dtype)


def product_rbf(x, y, l1_raw, s1_raw, l2_raw, s2_raw, *, out_dtype=jnp.float32):
    """Forward pass of Product(RBF(l1, s1), RBF(l2, s2)) at (x, y), diag=False."""
    x = x.astype(jnp.float32)
    y = y.astype(jnp.float32)
    N, nx = x.shape
    M, nx2 = y.shape
    assert nx == nx2, "wrong dimension."
    ny = l1_raw.shape[0]

    # ---- parameter transform + algebraic fusion (glue, not the hot path) ----
    l1 = lower_bounded(l1_raw).astype(jnp.float32)          # (ny, nx)
    l2 = lower_bounded(l2_raw).astype(jnp.float32)          # (ny, nx)
    s1 = lower_bounded(s1_raw).astype(jnp.float32)          # (ny,)
    s2 = lower_bounded(s2_raw).astype(jnp.float32)          # (ny,)
    sw = jnp.sqrt(1.0 / (l1 * l1) + 1.0 / (l2 * l2))        # (ny, nx) combined 1/lengthscale
    amp = (s1 * s2) ** 2                                    # (ny,)
    logamp = jnp.log(amp)                                   # (ny,)

    # ---- tile selection: lane-dense output, VMEM-safe on v5e/v6e/v7x ----
    TN = _pick_tile(N, 1024, 8)
    TM = _pick_tile(M, 2048, 128)
    gi = _cdiv(N, TN)
    gj = _cdiv(M, TM)
    Np = gi * TN
    Mp = gj * TM

    xp = x if Np == N else jnp.pad(x, ((0, Np - N), (0, 0)))
    yp = y if Mp == M else jnp.pad(y, ((0, Mp - M), (0, 0)))

    # ---- weighted + augmented point sets (wrapper-side, tiny vs the Gram) ----
    xw = xp[None, :, :] * sw[:, None, :]                    # (ny, Np, nx)
    yw = yp[None, :, :] * sw[:, None, :]                    # (ny, Mp, nx)
    xn = jnp.sum(xw * xw, axis=-1, keepdims=True)           # (ny, Np, 1)
    yn = jnp.sum(yw * yw, axis=-1, keepdims=True)           # (ny, Mp, 1)
    x_aug = jnp.concatenate(
        [xw, jnp.ones((ny, Np, 1), jnp.float32), -0.5 * xn], axis=-1)          # (ny, Np, K)
    y_aug = jnp.concatenate(
        [yw, -0.5 * yn + logamp[:, None, None],
         jnp.ones((ny, Mp, 1), jnp.float32)], axis=-1)                          # (ny, Mp, K)
    K = nx + 2

    # ---- grid: largest tile-count axis first (v7x TensorCore balance), o last ----
    if gj >= gi:
        grid = (gj, gi, ny)
        x_map = lambda j, i, o: (o, i, 0)
        y_map = lambda j, i, o: (o, j, 0)
        o_map = lambda j, i, o: (o, i, j)
    else:
        grid = (gi, gj, ny)
        x_map = lambda i, j, o: (o, i, 0)
        y_map = lambda i, j, o: (o, j, 0)
        o_map = lambda i, j, o: (o, i, j)

    out_itemsize = jnp.dtype(out_dtype).itemsize
    cost = pl.CostEstimate(
        flops=2 * ny * Np * Mp * K + 2 * ny * Np * Mp,
        transcendentals=ny * Np * Mp,
        bytes_accessed=out_itemsize * ny * N * M + 4 * ny * (Np + Mp) * K + 4 * ny,
    )

    out = pl.pallas_call(
        _product_rbf_kernel,
        out_shape=jax.ShapeDtypeStruct((ny, N, M), out_dtype),
        grid=grid,
        in_specs=[
            pl.BlockSpec(memory_space=pltpu.MemorySpace.SMEM),   # logamp (ny,)
            pl.BlockSpec((1, TN, K), x_map),                     # augmented x tile
            pl.BlockSpec((1, TM, K), y_map),                     # augmented y tile
        ],
        out_specs=pl.BlockSpec((1, TN, TM), o_map),
        compiler_params=pltpu.CompilerParams(
            dimension_semantics=("parallel", "parallel", "parallel"),
            vmem_limit_bytes=48 * 1024 * 1024),
        cost_estimate=cost,
    )(logamp, x_aug, y_aug)

    return out


def product_rbf_reference(x, y, l1_raw, s1_raw, l2_raw, s2_raw):
    """Pure-JAX reference of the same forward pass (unfused formulation)."""
    x = x.astype(jnp.float32)
    y = y.astype(jnp.float32)
    l1 = lower_bounded(l1_raw).astype(jnp.float32)
    l2 = lower_bounded(l2_raw).astype(jnp.float32)
    s1 = lower_bounded(s1_raw).astype(jnp.float32)
    s2 = lower_bounded(s2_raw).astype(jnp.float32)

    diff = x[:, None, :] - y[None, :, :]                               # (N, M, nx)
    d1 = jnp.sum((diff[None] / l1[:, None, None, :]) ** 2, axis=-1)    # (ny, N, M)
    d2 = jnp.sum((diff[None] / l2[:, None, None, :]) ** 2, axis=-1)
    k1 = (s1[:, None, None] ** 2) * jnp.exp(-0.5 * d1)
    k2 = (s2[:, None, None] ** 2) * jnp.exp(-0.5 * d2)
    return k1 * k2


if __name__ == "__main__":
    # small deterministic problem: N=16 query points, M=16 support points,
    # input_dim nx=4, output_dim ny=3
    N, M, nx, ny = 16, 16, 4, 3
    key = jax.random.PRNGKey(0)
    kx, ky, kl1, ks1, kl2, ks2 = jax.random.split(key, 6)

    x = jax.random.normal(kx, (N, nx), dtype=jnp.float32)
    y = jax.random.normal(ky, (M, nx), dtype=jnp.float32)

    # raw (unconstrained) hyperparameters of the two RBF operands
    l1_raw = 0.3 * jax.random.normal(kl1, (ny, nx), dtype=jnp.float32) + 0.5
    s1_raw = 0.3 * jax.random.normal(ks1, (ny,), dtype=jnp.float32) + 0.8
    l2_raw = 0.3 * jax.random.normal(kl2, (ny, nx), dtype=jnp.float32) + 0.7
    s2_raw = 0.3 * jax.random.normal(ks2, (ny,), dtype=jnp.float32) + 0.6

    out = product_rbf(x, y, l1_raw, s1_raw, l2_raw, s2_raw)
    out = jax.block_until_ready(out)

    ref = product_rbf_reference(x, y, l1_raw, s1_raw, l2_raw, s2_raw)
    assert out.shape == (ny, N, M)
    assert jnp.allclose(out, ref, rtol=1e-4, atol=1e-5), "mismatch vs reference"

    print("KERNEL_OK")
</pallas_src>

<mosaic_0001>
module attributes {stable_mosaic.version = 11 : i64} {
  func.func @_product_rbf_kernel(%arg0: i32, %arg1: i32, %arg2: i32, %arg3: memref<3xf32, #tpu.memory_space<smem>>, %arg4: memref<1x16x6xf32, #tpu.memory_space<vmem>>, %arg5: memref<1x16x6xf32, #tpu.memory_space<vmem>>, %arg6: memref<1x16x16xf32, #tpu.memory_space<vmem>>) attributes {dimension_semantics = [#tpu.dimension_semantics<parallel>, #tpu.dimension_semantics<parallel>, #tpu.dimension_semantics<parallel>], iteration_bounds = array<i64: 1, 1, 3>, scalar_prefetch = 0 : i64, scratch_operands = 0 : i64, tpu.core_type = #tpu.core_type<tc>, window_params = [{transform_indices = @transform_0, window_bounds = array<i64: 3>}, {transform_indices = @transform_1, window_bounds = array<i64: 1, 16, 6>}, {transform_indices = @transform_2, window_bounds = array<i64: 1, 16, 6>}, {transform_indices = @transform_3, window_bounds = array<i64: 1, 16, 16>}]} {
    %c0 = arith.constant 0 : index
    %c0_0 = arith.constant 0 : index
    %c0_1 = arith.constant 0 : index
    %0 = vector.load %arg4[%c0, %c0_0, %c0_1] : memref<1x16x6xf32, #tpu.memory_space<vmem>>, vector<1x16x6xf32>
    %1 = vector.shape_cast %0 : vector<1x16x6xf32> to vector<16x6xf32>
    %c0_2 = arith.constant 0 : index
    %c0_3 = arith.constant 0 : index
    %c0_4 = arith.constant 0 : index
    %2 = vector.load %arg5[%c0_2, %c0_3, %c0_4] : memref<1x16x6xf32, #tpu.memory_space<vmem>>, vector<1x16x6xf32>
    %3 = vector.shape_cast %2 : vector<1x16x6xf32> to vector<16x6xf32>
    %cst = arith.constant dense<0.000000e+00> : vector<16x16xf32>
    %4 = tpu.matmul %1, %3, %cst {dimension_numbers = #tpu.dot_dimension_numbers<[1], [1], [0], [0], [0, 0, 1, 0], [], []>, precision = #tpu.contract_precision<fp32>} : vector<16x6xf32>, vector<16x6xf32>, vector<16x16xf32> -> vector<16x16xf32>
    %5 = arith.index_cast %arg2 : i32 to index
    %6 = memref.load %arg3[%5] : memref<3xf32, #tpu.memory_space<smem>>
    %7 = vector.broadcast %6 : f32 to vector<16x16xf32>
    %8 = arith.minimumf %4, %7 : vector<16x16xf32>
    %9 = math.exp %8 : vector<16x16xf32>
    %c0_5 = arith.constant 0 : index
    %c0_6 = arith.constant 0 : index
    %c0_7 = arith.constant 0 : index
    %10 = vector.load %arg6[%c0_5, %c0_6, %c0_7] : memref<1x16x16xf32, #tpu.memory_space<vmem>>, vector<1x16x16xf32>
    %11 = vector.shape_cast %10 : vector<1x16x16xf32> to vector<16x16xf32>
    %12 = vector.shape_cast %9 : vector<16x16xf32> to vector<1x16x16xf32>
    tpu.vector_store %arg6[%c0_5, %c0_6, %c0_7], %12 {strides = array<i32>} : memref<1x16x16xf32, #tpu.memory_space<vmem>>, vector<1x16x16xf32>,
    return
  }
  func.func @transform_0(%arg0: i32, %arg1: i32, %arg2: i32) -> i32 {
    %c0_i32 = arith.constant 0 : i32
    %c0_i32_0 = arith.constant 0 : i32
    return %c0_i32 : i32
  }
  func.func @transform_1(%arg0: i32, %arg1: i32, %arg2: i32) -> (i32, i32, i32) {
    %c0_i32 = arith.constant 0 : i32
    %c0_i32_0 = arith.constant 0 : i32
    return %arg2, %arg1, %c0_i32 : i32, i32, i32
  }
  func.func @transform_2(%arg0: i32, %arg1: i32, %arg2: i32) -> (i32, i32, i32) {
    %c0_i32 = arith.constant 0 : i32
    %c0_i32_0 = arith.constant 0 : i32
    return %arg2, %arg0, %c0_i32 : i32, i32, i32
  }
  func.func @transform_3(%arg0: i32, %arg1: i32, %arg2: i32) -> (i32, i32, i32) {
    %c0_i32 = arith.constant 0 : i32
    return %arg2, %arg1, %arg0 : i32, i32, i32
  }
}

</mosaic_0001>

<llo_original>
// kernel: tpu_custom_call.1
$region0: #{tpu_custom_call.1}
  #allocation0 [shape = 'u32[]', space=smem, size = 0x4, offset = 0x4, fixed_abs, tag = 'smem constant byte address 0x4 - core index']
  #allocation1 [shape = 'u32[144,128]{1,0:T(1,128)}', space=vmem, size = 0x12000, scoped, tag = 'internal scratch']
  %s0 = inlined_call_operand.vmem [shape: f32[3], index: 0, kind: input, shape index: {}]
  %s1 = inlined_call_operand.vmem [shape: f32[3,16,6], index: 1, kind: input, shape index: {}]
  %s2 = inlined_call_operand.vmem [shape: f32[3,16,6], index: 2, kind: input, shape index: {}]
  %s3 = inlined_call_operand.hbm [shape: f32[3,16,16], index: 3, kind: output, shape index: {}]
  %s4 = sld [smem:[#allocation0]]
  $region49: #{tpu_custom_call.1} parent=0
    _
  %s6 = ssub.s32 1, %s4
  %s7 = scalar_select 0, %s6, %s4
  $region1: #{tpu_custom_call.1} parent=0
    #allocation2 [shape = 'u8[512]{0}', space=smem, size = 0x200, scoped, tag = 'input window, operand 0, single buffered']
    #allocation3 [shape = 's32[2]{0}', space=sflag, size = 0x8, scoped, tag = 'scoped memory for tpu_custom_call.1']
    #allocation4 [shape = 's32[2]{0}', space=sflag, size = 0x8, scoped, tag = 'scoped memory for tpu_custom_call.1']
    #allocation5 [shape = 'u8[16384]{0}', space=vmem, size = 0x4000, scoped, tag = 'output window, operand 0']
    %8 = vsyncpa [#allocation4], 0
    %9 = vsyncpa [#allocation3], 0
    %s10 = scalar_lea.sflag [#allocation3], 1
    %11 = vsyncpa %s10, 0
    loop: start=0, step=1, limit=5
    $region2: #{tpu_custom_call.1} parent=1 // loop_pre_header
      _
    $region3: #{tpu_custom_call.1} parent=1 // loop_header
      %s13 = sphi 0, %s17
      %p14 = scmp.ge.s32.totalorder %s13, 5
      %s20 = sphi 0, %s39
      %s21 = sphi 0, %s35
      %s22 = sphi 0, %s31
      %s23 = sphi 0, %s20
      %s24 = sphi 0, %s21
      %s25 = sphi 0, %s22
      %s26 = sphi 0, %s23
      %s27 = sphi 0, %s24
      %s28 = sphi 0, %s25
      %s40 = sphi 0, %s40
      %s42 = sphi 0, %s40
      %s43 = sphi 0, %s42
      %s57 = sphi 0, %s43
      %s65 = sphi 0, %s67
      %s68 = sphi 0, %s65
      %s69 = sphi 0, %s68
      %s85 = sphi 0, %s69
      %s93 = sphi 0, %s95
      %s96 = sphi 0, %s93
      %s97 = sphi 0, %s96
      %s113 = sphi 0, %s97
      %s123 = sphi 0, %s125
      %s126 = sphi 0, %s123
      %s127 = sphi 0, %s126
      %s143 = sphi 0, %s127
    $region4: #{tpu_custom_call.1} parent=1 // loop_header_branch
      %16 = sbr.rel (%p14) target = $region8
    $region5: #{tpu_custom_call.1} parent=1 // loop_body
      %s18 = ssub.s32 %s13, 1
      %s19 = ssub.s32 %s13, 2
      %s29 = sadd.s32 1, %s22
      %p30 = scmp.ge.s32.totalorder %s29, 3
      %s31 = scalar_select %p30, 0, %s29
      %s32 = sadd.s32 1, %s21
      %s33 = scalar_select %p30, %s32, %s21
      %p34 = scmp.ge.s32.totalorder %s33, 1
      %s35 = scalar_select %p34, 0, %s33
      %s36 = sadd.s32 1, %s20
      %s37 = scalar_select %p34, %s36, %s20
      %p38 = scmp.ge.s32.totalorder %s37, 1
      %s39 = scalar_select %p38, 0, %s37
      %s41 = sadd.s32 %s40, 1
      %p44 = scmp.eq.s32.totalorder %s13, 2
      %p45 = scmp.ne.s32.totalorder %s40, %s42
      %p46 = scmp.eq.s32.totalorder %s13, 0
      %p47 = por %p45, %p46
      %p48 = scmp.ne.s32.totalorder %s40, %s42
      %p49 = scmp.eq.s32.totalorder %s18, 2
      %p50 = por %p48, %p49
      %p51 = scmp.ne.s32.totalorder %s42, %s43
      %p52 = scmp.eq.s32.totalorder %s18, 0
      %p53 = por %p51, %p52
      %p54 = scmp.ne.s32.totalorder %s42, %s43
      %p55 = scmp.eq.s32.totalorder %s19, 2
      %p56 = por %p54, %p55
      %p58 = scmp.ne.s32.totalorder %s43, %s57
      %p59 = scmp.eq.s32.totalorder %s19, 0
      %p60 = por %p58, %p59
      %s61 = ssub.s32 %s22, %s31
      %s62 = ssub.s32 %s21, %s35
      %s63 = sor.u32 %s61, %s62
      %p64 = scmp.eq.s32.totalorder %s63, 0
      %s66 = sadd.s32 %s65, 1
      %s67 = scalar_select %p64, %s65, %s66
      %p70 = pneg %p64
      %p71 = scmp.eq.s32.totalorder %s13, 2
      %p72 = por %p70, %p71
      %p73 = scmp.ne.s32.totalorder %s65, %s68
      %p74 = scmp.eq.s32.totalorder %s13, 0
      %p75 = por %p73, %p74
      %p76 = scmp.ne.s32.totalorder %s65, %s68
      %p77 = scmp.eq.s32.totalorder %s18, 2
      %p78 = por %p76, %p77
      %p79 = scmp.ne.s32.totalorder %s68, %s69
      %p80 = scmp.eq.s32.totalorder %s18, 0
      %p81 = por %p79, %p80
      %p82 = scmp.ne.s32.totalorder %s68, %s69
      %p83 = scmp.eq.s32.totalorder %s19, 2
      %p84 = por %p82, %p83
      %p86 = scmp.ne.s32.totalorder %s69, %s85
      %p87 = scmp.eq.s32.totalorder %s19, 0
      %p88 = por %p86, %p87
      %s89 = ssub.s32 %s22, %s31
      %s90 = ssub.s32 %s20, %s39
      %s91 = sor.u32 %s89, %s90
      %p92 = scmp.eq.s32.totalorder %s91, 0
      %s94 = sadd.s32 %s93, 1
      %s95 = scalar_select %p92, %s93, %s94
      %p98 = pneg %p92
      %p99 = scmp.eq.s32.totalorder %s13, 2
      %p100 = por %p98, %p99
      %p101 = scmp.ne.s32.totalorder %s93, %s96
      %p102 = scmp.eq.s32.totalorder %s13, 0
      %p103 = por %p101, %p102
      %p104 = scmp.ne.s32.totalorder %s93, %s96
      %p105 = scmp.eq.s32.totalorder %s18, 2
      %p106 = por %p104, %p105
      %p107 = scmp.ne.s32.totalorder %s96, %s97
      %p108 = scmp.eq.s32.totalorder %s18, 0
      %p109 = por %p107, %p108
      %p110 = scmp.ne.s32.totalorder %s96, %s97
      %p111 = scmp.eq.s32.totalorder %s19, 2
      %p112 = por %p110, %p111
      %p114 = scmp.ne.s32.totalorder %s97, %s113
      %p115 = scmp.eq.s32.totalorder %s19, 0
      %p116 = por %p114, %p115
      %s117 = ssub.s32 %s22, %s31
      %s118 = ssub.s32 %s21, %s35
      %s119 = sor.u32 %s117, %s118
      %s120 = ssub.s32 %s20, %s39
      %s121 = sor.u32 %s119, %s120
      %p122 = scmp.eq.s32.totalorder %s121, 0
      %s124 = sadd.s32 %s123, 1
      %s125 = scalar_select %p122, %s123, %s124
      %p128 = pneg %p122
      %p129 = scmp.eq.s32.totalorder %s13, 2
      %p130 = por %p128, %p129
      %p131 = scmp.ne.s32.totalorder %s123, %s126
      %p132 = scmp.eq.s32.totalorder %s13, 0
      %p133 = por %p131, %p132
      %p134 = scmp.ne.s32.totalorder %s123, %s126
      %p135 = scmp.eq.s32.totalorder %s18, 2
      %p136 = por %p134, %p135
      %p137 = scmp.ne.s32.totalorder %s126, %s127
      %p138 = scmp.eq.s32.totalorder %s18, 0
      %p139 = por %p137, %p138
      %p140 = scmp.ne.s32.totalorder %s126, %s127
      %p141 = scmp.eq.s32.totalorder %s19, 2
      %p142 = por %p140, %p141
      %p144 = scmp.ne.s32.totalorder %s127, %s143
      %p145 = scmp.eq.s32.totalorder %s19, 0
      %p146 = por %p144, %p145
      %p147 = scmp.le.s32.totalorder 1, %s13
      %p148 = scmp.lt.s32.totalorder %s13, 4
      %p149 = pnand %p147, %p148
      %p150 = pneg %p149
      // Predicated region
      $region9: #{tpu_custom_call.1} parent=5 // pred_check
        _
      $region10: #{tpu_custom_call.1} parent=5 // pred_check_branch
        %152 = sbr.rel (%p149) target = $region12
      $region11: #{tpu_custom_call.1} parent=5 // pred_region
        %s153 = ssub.s32 %s13, 1
        // Predicated region
        $region13: #{tpu_custom_call.1} parent=11 // pred_check
          %p154 = pneg %p53
        $region14: #{tpu_custom_call.1} parent=11 // pred_check_branch
          %156 = sbr.rel (%p154) target = $region16
        $region15: #{tpu_custom_call.1} parent=11 // pred_region
          %s158 = ssub.s32 16, 16
          %159 = vsyncadd [#allocation4], %s158
          %s161 = sshll.u32 %s0, 4
          %s162 = int_to_ptr.vmem [resolvable:$true] %s161
          %164 = dma.vmem_to_smem %s162, 16, [#allocation2], [#allocation4]
        $region16: #{tpu_custom_call.1} parent=11 // pred_fallthru
          _
      $region12: #{tpu_custom_call.1} parent=5 // pred_fallthru
        _
      %p165 = scmp.lt.s32.totalorder %s13, 3
      // Predicated region
      $region17: #{tpu_custom_call.1} parent=5 // pred_check
        %p166 = pneg %p165
      $region18: #{tpu_custom_call.1} parent=5 // pred_check_branch
        %168 = sbr.rel (%p166) target = $region20
      $region19: #{tpu_custom_call.1} parent=5 // pred_region
        // Predicated region
        $region21: #{tpu_custom_call.1} parent=19 // pred_check
          %p169 = pneg %p75
        $region22: #{tpu_custom_call.1} parent=19 // pred_check_branch
          %171 = sbr.rel (%p169) target = $region24
        $region23: #{tpu_custom_call.1} parent=19 // pred_region
          %s172 = smul.u32 2, %s21
          %p173 = scmp.lt.s32.totalorder %s22, 2
          %s174 = scalar_select %p173, %s22, 2
          %p175 = scmp.lt.s32.totalorder %s172, 1
          %s176 = scalar_select %p175, %s172, 1
          %s177 = smul.addr %s174, 2
          %s178 = sadd.s32 %s176, %s177
          %s179 = smul.addr %s178, 8
          %s180 = scalar_lea.vmem %s1, %s179
          %s181 = smul.u32 2, %s21
        $region24: #{tpu_custom_call.1} parent=19 // pred_fallthru
          _
        // Predicated region
        $region25: #{tpu_custom_call.1} parent=19 // pred_check
          %p182 = pneg %p103
        $region26: #{tpu_custom_call.1} parent=19 // pred_check_branch
          %184 = sbr.rel (%p182) target = $region28
        $region27: #{tpu_custom_call.1} parent=19 // pred_region
          %s185 = smul.u32 2, %s20
          %p186 = scmp.lt.s32.totalorder %s22, 2
          %s187 = scalar_select %p186, %s22, 2
          %p188 = scmp.lt.s32.totalorder %s185, 1
          %s189 = scalar_select %p188, %s185, 1
          %s190 = smul.addr %s187, 2
          %s191 = sadd.s32 %s189, %s190
          %s192 = smul.addr %s191, 8
          %s193 = scalar_lea.vmem %s2, %s192
          %s194 = smul.u32 2, %s20
        $region28: #{tpu_custom_call.1} parent=19 // pred_fallthru
          _
      $region20: #{tpu_custom_call.1} parent=5 // pred_fallthru
        _
      %p195 = scmp.le.s32.totalorder 1, %s13
      %p196 = scmp.lt.s32.totalorder %s13, 4
      %p197 = pnand %p195, %p196
      %p198 = pneg %p197
      // Predicated region
      $region29: #{tpu_custom_call.1} parent=5 // pred_check
        _
      $region30: #{tpu_custom_call.1} parent=5 // pred_check_branch
        %200 = sbr.rel (%p197) target = $region32
      $region31: #{tpu_custom_call.1} parent=5 // pred_region
        %s201 = ssub.s32 %s13, 1
        // Predicated region
        $region33: #{tpu_custom_call.1} parent=31 // pred_check
          %p202 = pneg %p53
        $region34: #{tpu_custom_call.1} parent=31 // pred_check_branch
          %204 = sbr.rel (%p202) target = $region36
        $region35: #{tpu_custom_call.1} parent=31 // pred_region
          %205 = dma.done [#allocation4], 16
        $region36: #{tpu_custom_call.1} parent=31 // pred_fallthru
          _
        %206 = sfence
        %p207 = pneg %p53
        %p208 = pneg %p50
        %s209 = smul.u32 2, %s24
        %p210 = scmp.lt.s32.totalorder %s25, 2
        %s211 = scalar_select %p210, %s25, 2
        %p212 = scmp.lt.s32.totalorder %s209, 1
        %s213 = scalar_select %p212, %s209, 1
        %s214 = smul.addr %s211, 2
        %s215 = sadd.s32 %s213, %s214
        %s216 = smul.addr %s215, 8
        %s217 = scalar_lea.vmem %s1, %s216
        %p218 = pneg %p81
        %p219 = pneg %p78
        %s220 = smul.u32 2, %s23
        %p221 = scmp.lt.s32.totalorder %s25, 2
        %s222 = scalar_select %p221, %s25, 2
        %p223 = scmp.lt.s32.totalorder %s220, 1
        %s224 = scalar_select %p223, %s220, 1
        %s225 = smul.addr %s222, 2
        %s226 = sadd.s32 %s224, %s225
        %s227 = smul.addr %s226, 8
        %s228 = scalar_lea.vmem %s2, %s227
        %p229 = pneg %p109
        %p230 = pneg %p106
        %p231 = pneg %p139
        %p232 = pneg %p136
        %s233 = sand.u32 %s126, 1
        %s234 = scalar_lea.sflag [#allocation3], %s233
        %s235 = sand.u32 %s126, 1
        %s236 = smul.addr %s235, 16
        %s237 = scalar_lea.vmem [#allocation5], %s236
        %s238 = smul.u32 2, %s24
        %p239 = scmp.lt.s32.totalorder %s25, 2
        %s240 = scalar_select %p239, %s25, 2
        %p241 = scmp.lt.s32.totalorder %s238, 1
        %s242 = scalar_select %p241, %s238, 1
        %s243 = smul.addr %s240, 2
        %s244 = sadd.s32 %s242, %s243
        %s245 = smul.addr %s244, 8
        %s246 = scalar_lea.vmem %s1, %s245
        %s247 = smul.u32 2, %s24
        %s248 = smul.u32 2, %s23
        %p249 = scmp.lt.s32.totalorder %s25, 2
        %s250 = scalar_select %p249, %s25, 2
        %p251 = scmp.lt.s32.totalorder %s248, 1
        %s252 = scalar_select %p251, %s248, 1
        %s253 = smul.addr %s250, 2
        %s254 = sadd.s32 %s252, %s253
        %s255 = smul.addr %s254, 8
        %s256 = scalar_lea.vmem %s2, %s255
        %s257 = smul.u32 2, %s23
        %s258 = smul.u32 2, %s24
        %v259 = vld [vmem:[%s246] sm:$0xff]
        %v260 = vld [vmem:[%s246 + $0x8] sm:$0xff]
        %v261 = vld [vmem:[%s256] sm:$0xff]
        %v262 = vld [vmem:[%s256 + $0x8] sm:$0xff]
        %vm263 = vcmask 48128
        %v265 = vsel %vm263, %v259, 0
        %v268 = vsel %vm263, %v260, 0
        %v271 = vsel %vm263, %v261, 0
        %v274 = vsel %vm263, %v262, 0
        %276 = vmatprep.subr.mxu0 0.0
        %v277 = vand.u32 %v271, 4294901760
        %278 = vmatpush1.xpose.msra.mxu0 %v277
        %279 = vmatprep.subr.mxu0 0.0
        %v280 = vand.u32 %v274, 4294901760
        %281 = vmatpush1.xpose.msra.mxu0 %v280
        %282 = vmatprep.subr.mxu0 0.0
        %283 = vmatpush1.xpose.msra.mxu0 0.0
        %284 = vmatprep.subr.mxu0 0.0
        %285 = vmatpush1.xpose.msra.mxu0 0.0
        %286 = vmatprep.subr.mxu0 0.0
        %287 = vmatpush1.xpose.msra.mxu0 0.0
        %288 = vmatprep.subr.mxu0 0.0
        %289 = vmatpush1.xpose.msra.mxu0 0.0
        %290 = vmatprep.subr.mxu0 0.0
        %291 = vmatpush1.xpose.msra.mxu0 0.0
        %292 = vmatprep.subr.mxu0 0.0
        %293 = vmatpush1.xpose.msra.mxu0 0.0
        %294 = vmatprep.subr.mxu0 0.0
        %295 = vmatpush1.xpose.msra.mxu0 0.0
        %296 = vmatprep.subr.mxu0 0.0
        %297 = vmatpush1.xpose.msra.mxu0 0.0
        %298 = vmatprep.subr.mxu0 0.0
        %299 = vmatpush1.xpose.msra.mxu0 0.0
        %300 = vmatprep.subr.mxu0 0.0
        %301 = vmatpush1.xpose.msra.mxu0 0.0
        %302 = vmatprep.subr.mxu0 0.0
        %303 = vmatpush1.xpose.msra.mxu0 0.0
        %304 = vmatprep.subr.mxu0 0.0
        %305 = vmatpush1.xpose.msra.mxu0 0.0
        %306 = vmatprep.subr.mxu0 0.0
        %307 = vmatpush1.xpose.msra.mxu0 0.0
        %308 = vmatprep.subr.mxu0 0.0
        %309 = vmatpush1.xpose.msra.mxu0 0.0
        %310 = vmatprep.subr.mxu0 0.0
        %311 = vmatpush1.xpose.msra.mxu0 0.0
        %312 = vmatprep.subr.mxu0 0.0
        %313 = vmatpush1.xpose.msra.mxu0 0.0
        %314 = vmatprep.subr.mxu0 0.0
        %315 = vmatpush1.xpose.msra.mxu0 0.0
        %316 = vmatprep.subr.mxu0 0.0
        %317 = vmatpush1.xpose.msra.mxu0 0.0
        %318 = vmatprep.subr.mxu0 0.0
        %319 = vmatpush1.xpose.msra.mxu0 0.0
        %320 = vmatprep.subr.mxu0 0.0
        %321 = vmatpush1.xpose.msra.mxu0 0.0
        %322 = vmatprep.subr.mxu0 0.0
        %323 = vmatpush1.xpose.msra.mxu0 0.0
        %324 = vmatprep.subr.mxu0 0.0
        %325 = vmatpush1.xpose.msra.mxu0 0.0
        %326 = vmatprep.subr.mxu0 0.0
        %327 = vmatpush1.xpose.msra.mxu0 0.0
        %328 = vmatprep.subr.mxu0 0.0
        %329 = vmatpush1.xpose.msra.mxu0 0.0
        %330 = vmatprep.subr.mxu0 0.0
        %331 = vmatpush1.xpose.msra.mxu0 0.0
        %332 = vmatprep.subr.mxu0 0.0
        %333 = vmatpush1.xpose.msra.mxu0 0.0
        %334 = vmatprep.subr.mxu0 0.0
        %335 = vmatpush1.xpose.msra.mxu0 0.0
        %336 = vmatprep.subr.mxu0 0.0
        %337 = vmatpush1.xpose.msra.mxu0 0.0
        %338 = vmatprep.subr.mxu0 0.0
        %339 = vmatpush1.xpose.msra.mxu0 0.0
        %340 = vmatprep.subr.mxu0 0.0
        %341 = vmatpush1.xpose.msra.mxu0 0.0
        %342 = vmatprep.mubr.f32.mxu0 0.0
        %v343 = vand.u32 %v265, 4294901760
        %v344 = vsub.f32 %v265, %v343
        %v345 = vand.u32 %v344, 4294901760
        %v346 = vsub.f32 %v344, %v345
        %v347 = vand.u32 %v346, 4294901760
        %348 = vmatmul.mubr.f32.gmra.mrb[0].mxu0 %v347
        %v349 = vpop.f32.mrb[0].mxu0
        %v350 = vadd.f32 0.0, %v349
        %v351 = vpop.f32.mrb[0].mxu0
        %352 = vmatprep.mubr.f32.mxu0 0.0
        %v353 = vand.u32 %v268, 4294901760
        %v354 = vsub.f32 %v268, %v353
        %v355 = vand.u32 %v354, 4294901760
        %v356 = vsub.f32 %v354, %v355
        %v357 = vand.u32 %v356, 4294901760
        %358 = vmatmul.mubr.f32.gmra.mrb[0].mxu0 %v357
        %v359 = vpop.f32.mrb[0].mxu0
        %v360 = vadd.f32 0.0, %v359
        %v361 = vpop.f32.mrb[0].mxu0
        %362 = vdwg.mxu0
        %363 = vmatprep.subr.mxu0 0.0
        %v364 = vand.u32 %v271, 4294901760
        %v365 = vsub.f32 %v271, %v364
        %v366 = vand.u32 %v365, 4294901760
        %v367 = vsub.f32 %v365, %v366
        %v368 = vand.u32 %v367, 4294901760
        %369 = vmatpush1.xpose.msra.mxu0 %v368
        %370 = vmatprep.subr.mxu0 0.0
        %v371 = vand.u32 %v274, 4294901760
        %v372 = vsub.f32 %v274, %v371
        %v373 = vand.u32 %v372, 4294901760
        %v374 = vsub.f32 %v372, %v373
        %v375 = vand.u32 %v374, 4294901760
        %376 = vmatpush1.xpose.msra.mxu0 %v375
        %377 = vmatprep.subr.mxu0 0.0
        %378 = vmatpush1.xpose.msra.mxu0 0.0
        %379 = vmatprep.subr.mxu0 0.0
        %380 = vmatpush1.xpose.msra.mxu0 0.0
        %381 = vmatprep.subr.mxu0 0.0
        %382 = vmatpush1.xpose.msra.mxu0 0.0
        %383 = vmatprep.subr.mxu0 0.0
        %384 = vmatpush1.xpose.msra.mxu0 0.0
        %385 = vmatprep.subr.mxu0 0.0
        %386 = vmatpush1.xpose.msra.mxu0 0.0
        %387 = vmatprep.subr.mxu0 0.0
        %388 = vmatpush1.xpose.msra.mxu0 0.0
        %389 = vmatprep.subr.mxu0 0.0
        %390 = vmatpush1.xpose.msra.mxu0 0.0
        %391 = vmatprep.subr.mxu0 0.0
        %392 = vmatpush1.xpose.msra.mxu0 0.0
        %393 = vmatprep.subr.mxu0 0.0
        %394 = vmatpush1.xpose.msra.mxu0 0.0
        %395 = vmatprep.subr.mxu0 0.0
        %396 = vmatpush1.xpose.msra.mxu0 0.0
        %397 = vmatprep.subr.mxu0 0.0
        %398 = vmatpush1.xpose.msra.mxu0 0.0
        %399 = vmatprep.subr.mxu0 0.0
        %400 = vmatpush1.xpose.msra.mxu0 0.0
        %401 = vmatprep.subr.mxu0 0.0
        %402 = vmatpush1.xpose.msra.mxu0 0.0
        %403 = vmatprep.subr.mxu0 0.0
        %404 = vmatpush1.xpose.msra.mxu0 0.0
        %405 = vmatprep.subr.mxu0 0.0
        %406 = vmatpush1.xpose.msra.mxu0 0.0
        %407 = vmatprep.subr.mxu0 0.0
        %408 = vmatpush1.xpose.msra.mxu0 0.0
        %409 = vmatprep.subr.mxu0 0.0
        %410 = vmatpush1.xpose.msra.mxu0 0.0
        %411 = vmatprep.subr.mxu0 0.0
        %412 = vmatpush1.xpose.msra.mxu0 0.0
        %413 = vmatprep.subr.mxu0 0.0
        %414 = vmatpush1.xpose.msra.mxu0 0.0
        %415 = vmatprep.subr.mxu0 0.0
        %416 = vmatpush1.xpose.msra.mxu0 0.0
        %417 = vmatprep.subr.mxu0 0.0
        %418 = vmatpush1.xpose.msra.mxu0 0.0
        %419 = vmatprep.subr.mxu0 0.0
        %420 = vmatpush1.xpose.msra.mxu0 0.0
        %421 = vmatprep.subr.mxu0 0.0
        %422 = vmatpush1.xpose.msra.mxu0 0.0
        %423 = vmatprep.subr.mxu0 0.0
        %424 = vmatpush1.xpose.msra.mxu0 0.0
        %425 = vmatprep.subr.mxu0 0.0
        %426 = vmatpush1.xpose.msra.mxu0 0.0
        %427 = vmatprep.subr.mxu0 0.0
        %428 = vmatpush1.xpose.msra.mxu0 0.0
        %429 = vmatprep.subr.mxu0 0.0
        %430 = vmatpush1.xpose.msra.mxu0 0.0
        %431 = vmatprep.subr.mxu0 0.0
        %432 = vmatpush1.xpose.msra.mxu0 0.0
        %433 = vmatprep.subr.mxu0 0.0
        %434 = vmatpush1.xpose.msra.mxu0 0.0
        %435 = vmatprep.subr.mxu0 0.0
        %436 = vmatpush1.xpose.msra.mxu0 0.0
        %437 = vmatprep.mubr.f32.mxu0 0.0
        %v438 = vand.u32 %v265, 4294901760
        %439 = vmatmul.mubr.f32.gmra.mrb[0].mxu0 %v438
        %v440 = vpop.f32.mrb[0].mxu0
        %v441 = vadd.f32 %v350, %v440
        %v442 = vpop.f32.mrb[0].mxu0
        %443 = vmatprep.mubr.f32.mxu0 0.0
        %v444 = vand.u32 %v268, 4294901760
        %445 = vmatmul.mubr.f32.gmra.mrb[0].mxu0 %v444
        %v446 = vpop.f32.mrb[0].mxu0
        %v447 = vadd.f32 %v360, %v446
        %v448 = vpop.f32.mrb[0].mxu0
        %449 = vdwg.mxu0
        %450 = vmatprep.subr.mxu0 0.0
        %v451 = vand.u32 %v271, 4294901760
        %v452 = vsub.f32 %v271, %v451
        %453 = vmatpush1.xpose.msra.mxu0 %v452
        %454 = vmatprep.subr.mxu0 0.0
        %v455 = vand.u32 %v274, 4294901760
        %v456 = vsub.f32 %v274, %v455
        %457 = vmatpush1.xpose.msra.mxu0 %v456
        %458 = vmatprep.subr.mxu0 0.0
        %459 = vmatpush1.xpose.msra.mxu0 0.0
        %460 = vmatprep.subr.mxu0 0.0
        %461 = vmatpush1.xpose.msra.mxu0 0.0
        %462 = vmatprep.subr.mxu0 0.0
        %463 = vmatpush1.xpose.msra.mxu0 0.0
        %464 = vmatprep.subr.mxu0 0.0
        %465 = vmatpush1.xpose.msra.mxu0 0.0
        %466 = vmatprep.subr.mxu0 0.0
        %467 = vmatpush1.xpose.msra.mxu0 0.0
        %468 = vmatprep.subr.mxu0 0.0
        %469 = vmatpush1.xpose.msra.mxu0 0.0
        %470 = vmatprep.subr.mxu0 0.0
        %471 = vmatpush1.xpose.msra.mxu0 0.0
        %472 = vmatprep.subr.mxu0 0.0
        %473 = vmatpush1.xpose.msra.mxu0 0.0
        %474 = vmatprep.subr.mxu0 0.0
        %475 = vmatpush1.xpose.msra.mxu0 0.0
        %476 = vmatprep.subr.mxu0 0.0
        %477 = vmatpush1.xpose.msra.mxu0 0.0
        %478 = vmatprep.subr.mxu0 0.0
        %479 = vmatpush1.xpose.msra.mxu0 0.0
        %480 = vmatprep.subr.mxu0 0.0
        %481 = vmatpush1.xpose.msra.mxu0 0.0
        %482 = vmatprep.subr.mxu0 0.0
        %483 = vmatpush1.xpose.msra.mxu0 0.0
        %484 = vmatprep.subr.mxu0 0.0
        %485 = vmatpush1.xpose.msra.mxu0 0.0
        %486 = vmatprep.subr.mxu0 0.0
        %487 = vmatpush1.xpose.msra.mxu0 0.0
        %488 = vmatprep.subr.mxu0 0.0
        %489 = vmatpush1.xpose.msra.mxu0 0.0
        %490 = vmatprep.subr.mxu0 0.0
        %491 = vmatpush1.xpose.msra.mxu0 0.0
        %492 = vmatprep.subr.mxu0 0.0
        %493 = vmatpush1.xpose.msra.mxu0 0.0
        %494 = vmatprep.subr.mxu0 0.0
        %495 = vmatpush1.xpose.msra.mxu0 0.0
        %496 = vmatprep.subr.mxu0 0.0
        %497 = vmatpush1.xpose.msra.mxu0 0.0
        %498 = vmatprep.subr.mxu0 0.0
        %499 = vmatpush1.xpose.msra.mxu0 0.0
        %500 = vmatprep.subr.mxu0 0.0
        %501 = vmatpush1.xpose.msra.mxu0 0.0
        %502 = vmatprep.subr.mxu0 0.0
        %503 = vmatpush1.xpose.msra.mxu0 0.0
        %504 = vmatprep.subr.mxu0 0.0
        %505 = vmatpush1.xpose.msra.mxu0 0.0
        %506 = vmatprep.subr.mxu0 0.0
        %507 = vmatpush1.xpose.msra.mxu0 0.0
        %508 = vmatprep.subr.mxu0 0.0
        %509 = vmatpush1.xpose.msra.mxu0 0.0
        %510 = vmatprep.subr.mxu0 0.0
        %511 = vmatpush1.xpose.msra.mxu0 0.0
        %512 = vmatprep.subr.mxu0 0.0
        %513 = vmatpush1.xpose.msra.mxu0 0.0
        %514 = vmatprep.subr.mxu0 0.0
        %515 = vmatpush1.xpose.msra.mxu0 0.0
        %516 = vmatprep.subr.mxu0 0.0
        %517 = vmatpush1.xpose.msra.mxu0 0.0
        %518 = vmatprep.mubr.f32.mxu0 0.0
        %v519 = vand.u32 %v265, 4294901760
        %v520 = vsub.f32 %v265, %v519
        %521 = vmatmul.mubr.f32.gmra.mrb[0].mxu0 %v520
        %v522 = vpop.f32.mrb[0].mxu0
        %v523 = vadd.f32 %v441, %v522
        %v524 = vpop.f32.mrb[0].mxu0
        %525 = vmatprep.mubr.f32.mxu0 0.0
        %v526 = vand.u32 %v268, 4294901760
        %v527 = vsub.f32 %v268, %v526
        %528 = vmatmul.mubr.f32.gmra.mrb[0].mxu0 %v527
        %v529 = vpop.f32.mrb[0].mxu0
        %v530 = vadd.f32 %v447, %v529
        %v531 = vpop.f32.mrb[0].mxu0
        %532 = vdwg.mxu0
        %533 = vmatprep.subr.mxu0 0.0
        %v534 = vand.u32 %v271, 4294901760
        %535 = vmatpush1.xpose.msra.mxu0 %v534
        %536 = vmatprep.subr.mxu0 0.0
        %v537 = vand.u32 %v274, 4294901760
        %538 = vmatpush1.xpose.msra.mxu0 %v537
        %539 = vmatprep.subr.mxu0 0.0
        %540 = vmatpush1.xpose.msra.mxu0 0.0
        %541 = vmatprep.subr.mxu0 0.0
        %542 = vmatpush1.xpose.msra.mxu0 0.0
        %543 = vmatprep.subr.mxu0 0.0
        %544 = vmatpush1.xpose.msra.mxu0 0.0
        %545 = vmatprep.subr.mxu0 0.0
        %546 = vmatpush1.xpose.msra.mxu0 0.0
        %547 = vmatprep.subr.mxu0 0.0
        %548 = vmatpush1.xpose.msra.mxu0 0.0
        %549 = vmatprep.subr.mxu0 0.0
        %550 = vmatpush1.xpose.msra.mxu0 0.0
        %551 = vmatprep.subr.mxu0 0.0
        %552 = vmatpush1.xpose.msra.mxu0 0.0
        %553 = vmatprep.subr.mxu0 0.0
        %554 = vmatpush1.xpose.msra.mxu0 0.0
        %555 = vmatprep.subr.mxu0 0.0
        %556 = vmatpush1.xpose.msra.mxu0 0.0
        %557 = vmatprep.subr.mxu0 0.0
        %558 = vmatpush1.xpose.msra.mxu0 0.0
        %559 = vmatprep.subr.mxu0 0.0
        %560 = vmatpush1.xpose.msra.mxu0 0.0
        %561 = vmatprep.subr.mxu0 0.0
        %562 = vmatpush1.xpose.msra.mxu0 0.0
        %563 = vmatprep.subr.mxu0 0.0
        %564 = vmatpush1.xpose.msra.mxu0 0.0
        %565 = vmatprep.subr.mxu0 0.0
        %566 = vmatpush1.xpose.msra.mxu0 0.0
        %567 = vmatprep.subr.mxu0 0.0
        %568 = vmatpush1.xpose.msra.mxu0 0.0
        %569 = vmatprep.subr.mxu0 0.0
        %570 = vmatpush1.xpose.msra.mxu0 0.0
        %571 = vmatprep.subr.mxu0 0.0
        %572 = vmatpush1.xpose.msra.mxu0 0.0
        %573 = vmatprep.subr.mxu0 0.0
        %574 = vmatpush1.xpose.msra.mxu0 0.0
        %575 = vmatprep.subr.mxu0 0.0
        %576 = vmatpush1.xpose.msra.mxu0 0.0
        %577 = vmatprep.subr.mxu0 0.0
        %578 = vmatpush1.xpose.msra.mxu0 0.0
        %579 = vmatprep.subr.mxu0 0.0
        %580 = vmatpush1.xpose.msra.mxu0 0.0
        %581 = vmatprep.subr.mxu0 0.0
        %582 = vmatpush1.xpose.msra.mxu0 0.0
        %583 = vmatprep.subr.mxu0 0.0
        %584 = vmatpush1.xpose.msra.mxu0 0.0
        %585 = vmatprep.subr.mxu0 0.0
        %586 = vmatpush1.xpose.msra.mxu0 0.0
        %587 = vmatprep.subr.mxu0 0.0
        %588 = vmatpush1.xpose.msra.mxu0 0.0
        %589 = vmatprep.subr.mxu0 0.0
        %590 = vmatpush1.xpose.msra.mxu0 0.0
        %591 = vmatprep.subr.mxu0 0.0
        %592 = vmatpush1.xpose.msra.mxu0 0.0
        %593 = vmatprep.subr.mxu0 0.0
        %594 = vmatpush1.xpose.msra.mxu0 0.0
        %595 = vmatprep.subr.mxu0 0.0
        %596 = vmatpush1.xpose.msra.mxu0 0.0
        %597 = vmatprep.subr.mxu0 0.0
        %598 = vmatpush1.xpose.msra.mxu0 0.0
        %599 = vmatprep.mubr.f32.mxu0 0.0
        %v600 = vand.u32 %v265, 4294901760
        %v601 = vsub.f32 %v265, %v600
        %v602 = vand.u32 %v601, 4294901760
        %603 = vmatmul.mubr.f32.gmra.mrb[0].mxu0 %v602
        %v604 = vpop.f32.mrb[0].mxu0
        %v605 = vadd.f32 %v523, %v604
        %v606 = vpop.f32.mrb[0].mxu0
        %607 = vmatprep.mubr.f32.mxu0 0.0
        %v608 = vand.u32 %v268, 4294901760
        %v609 = vsub.f32 %v268, %v608
        %v610 = vand.u32 %v609, 4294901760
        %611 = vmatmul.mubr.f32.gmra.mrb[0].mxu0 %v610
        %v612 = vpop.f32.mrb[0].mxu0
        %v613 = vadd.f32 %v530, %v612
        %v614 = vpop.f32.mrb[0].mxu0
        %615 = vdwg.mxu0
        %616 = vmatprep.subr.mxu0 0.0
        %v617 = vand.u32 %v271, 4294901760
        %v618 = vsub.f32 %v271, %v617
        %v619 = vand.u32 %v618, 4294901760
        %620 = vmatpush1.xpose.msra.mxu0 %v619
        %621 = vmatprep.subr.mxu0 0.0
        %v622 = vand.u32 %v274, 4294901760
        %v623 = vsub.f32 %v274, %v622
        %v624 = vand.u32 %v623, 4294901760
        %625 = vmatpush1.xpose.msra.mxu0 %v624
        %626 = vmatprep.subr.mxu0 0.0
        %627 = vmatpush1.xpose.msra.mxu0 0.0
        %628 = vmatprep.subr.mxu0 0.0
        %629 = vmatpush1.xpose.msra.mxu0 0.0
        %630 = vmatprep.subr.mxu0 0.0
        %631 = vmatpush1.xpose.msra.mxu0 0.0
        %632 = vmatprep.subr.mxu0 0.0
        %633 = vmatpush1.xpose.msra.mxu0 0.0
        %634 = vmatprep.subr.mxu0 0.0
        %635 = vmatpush1.xpose.msra.mxu0 0.0
        %636 = vmatprep.subr.mxu0 0.0
        %637 = vmatpush1.xpose.msra.mxu0 0.0
        %638 = vmatprep.subr.mxu0 0.0
        %639 = vmatpush1.xpose.msra.mxu0 0.0
        %640 = vmatprep.subr.mxu0 0.0
        %641 = vmatpush1.xpose.msra.mxu0 0.0
        %642 = vmatprep.subr.mxu0 0.0
        %643 = vmatpush1.xpose.msra.mxu0 0.0
        %644 = vmatprep.subr.mxu0 0.0
        %645 = vmatpush1.xpose.msra.mxu0 0.0
        %646 = vmatprep.subr.mxu0 0.0
        %647 = vmatpush1.xpose.msra.mxu0 0.0
        %648 = vmatprep.subr.mxu0 0.0
        %649 = vmatpush1.xpose.msra.mxu0 0.0
        %650 = vmatprep.subr.mxu0 0.0
        %651 = vmatpush1.xpose.msra.mxu0 0.0
        %652 = vmatprep.subr.mxu0 0.0
        %653 = vmatpush1.xpose.msra.mxu0 0.0
        %654 = vmatprep.subr.mxu0 0.0
        %655 = vmatpush1.xpose.msra.mxu0 0.0
        %656 = vmatprep.subr.mxu0 0.0
        %657 = vmatpush1.xpose.msra.mxu0 0.0
        %658 = vmatprep.subr.mxu0 0.0
        %659 = vmatpush1.xpose.msra.mxu0 0.0
        %660 = vmatprep.subr.mxu0 0.0
        %661 = vmatpush1.xpose.msra.mxu0 0.0
        %662 = vmatprep.subr.mxu0 0.0
        %663 = vmatpush1.xpose.msra.mxu0 0.0
        %664 = vmatprep.subr.mxu0 0.0
        %665 = vmatpush1.xpose.msra.mxu0 0.0
        %666 = vmatprep.subr.mxu0 0.0
        %667 = vmatpush1.xpose.msra.mxu0 0.0
        %668 = vmatprep.subr.mxu0 0.0
        %669 = vmatpush1.xpose.msra.mxu0 0.0
        %670 = vmatprep.subr.mxu0 0.0
        %671 = vmatpush1.xpose.msra.mxu0 0.0
        %672 = vmatprep.subr.mxu0 0.0
        %673 = vmatpush1.xpose.msra.mxu0 0.0
        %674 = vmatprep.subr.mxu0 0.0
        %675 = vmatpush1.xpose.msra.mxu0 0.0
        %676 = vmatprep.subr.mxu0 0.0
        %677 = vmatpush1.xpose.msra.mxu0 0.0
        %678 = vmatprep.subr.mxu0 0.0
        %679 = vmatpush1.xpose.msra.mxu0 0.0
        %680 = vmatprep.subr.mxu0 0.0
        %681 = vmatpush1.xpose.msra.mxu0 0.0
        %682 = vmatprep.subr.mxu0 0.0
        %683 = vmatpush1.xpose.msra.mxu0 0.0
        %684 = vmatprep.subr.mxu0 0.0
        %685 = vmatpush1.xpose.msra.mxu0 0.0
        %686 = vmatprep.mubr.f32.mxu0 0.0
        %v687 = vand.u32 %v265, 4294901760
        %688 = vmatmul.mubr.f32.gmra.mrb[0].mxu0 %v687
        %v689 = vpop.f32.mrb[0].mxu0
        %v690 = vadd.f32 %v605, %v689
        %v691 = vpop.f32.mrb[0].mxu0
        %692 = vmatprep.mubr.f32.mxu0 0.0
        %v693 = vand.u32 %v268, 4294901760
        %694 = vmatmul.mubr.f32.gmra.mrb[0].mxu0 %v693
        %v695 = vpop.f32.mrb[0].mxu0
        %v696 = vadd.f32 %v613, %v695
        %v697 = vpop.f32.mrb[0].mxu0
        %698 = vdwg.mxu0
        %699 = vmatprep.subr.mxu0 0.0
        %v700 = vand.u32 %v271, 4294901760
        %701 = vmatpush1.xpose.msra.mxu0 %v700
        %702 = vmatprep.subr.mxu0 0.0
        %v703 = vand.u32 %v274, 4294901760
        %704 = vmatpush1.xpose.msra.mxu0 %v703
        %705 = vmatprep.subr.mxu0 0.0
        %706 = vmatpush1.xpose.msra.mxu0 0.0
        %707 = vmatprep.subr.mxu0 0.0
        %708 = vmatpush1.xpose.msra.mxu0 0.0
        %709 = vmatprep.subr.mxu0 0.0
        %710 = vmatpush1.xpose.msra.mxu0 0.0
        %711 = vmatprep.subr.mxu0 0.0
        %712 = vmatpush1.xpose.msra.mxu0 0.0
        %713 = vmatprep.subr.mxu0 0.0
        %714 = vmatpush1.xpose.msra.mxu0 0.0
        %715 = vmatprep.subr.mxu0 0.0
        %716 = vmatpush1.xpose.msra.mxu0 0.0
        %717 = vmatprep.subr.mxu0 0.0
        %718 = vmatpush1.xpose.msra.mxu0 0.0
        %719 = vmatprep.subr.mxu0 0.0
        %720 = vmatpush1.xpose.msra.mxu0 0.0
        %721 = vmatprep.subr.mxu0 0.0
        %722 = vmatpush1.xpose.msra.mxu0 0.0
        %723 = vmatprep.subr.mxu0 0.0
        %724 = vmatpush1.xpose.msra.mxu0 0.0
        %725 = vmatprep.subr.mxu0 0.0
        %726 = vmatpush1.xpose.msra.mxu0 0.0
        %727 = vmatprep.subr.mxu0 0.0
        %728 = vmatpush1.xpose.msra.mxu0 0.0
        %729 = vmatprep.subr.mxu0 0.0
        %730 = vmatpush1.xpose.msra.mxu0 0.0
        %731 = vmatprep.subr.mxu0 0.0
        %732 = vmatpush1.xpose.msra.mxu0 0.0
        %733 = vmatprep.subr.mxu0 0.0
        %734 = vmatpush1.xpose.msra.mxu0 0.0
        %735 = vmatprep.subr.mxu0 0.0
        %736 = vmatpush1.xpose.msra.mxu0 0.0
        %737 = vmatprep.subr.mxu0 0.0
        %738 = vmatpush1.xpose.msra.mxu0 0.0
        %739 = vmatprep.subr.mxu0 0.0
        %740 = vmatpush1.xpose.msra.mxu0 0.0
        %741 = vmatprep.subr.mxu0 0.0
        %742 = vmatpush1.xpose.msra.mxu0 0.0
        %743 = vmatprep.subr.mxu0 0.0
        %744 = vmatpush1.xpose.msra.mxu0 0.0
        %745 = vmatprep.subr.mxu0 0.0
        %746 = vmatpush1.xpose.msra.mxu0 0.0
        %747 = vmatprep.subr.mxu0 0.0
        %748 = vmatpush1.xpose.msra.mxu0 0.0
        %749 = vmatprep.subr.mxu0 0.0
        %750 = vmatpush1.xpose.msra.mxu0 0.0
        %751 = vmatprep.subr.mxu0 0.0
        %752 = vmatpush1.xpose.msra.mxu0 0.0
        %753 = vmatprep.subr.mxu0 0.0
        %754 = vmatpush1.xpose.msra.mxu0 0.0
        %755 = vmatprep.subr.mxu0 0.0
        %756 = vmatpush1.xpose.msra.mxu0 0.0
        %757 = vmatprep.subr.mxu0 0.0
        %758 = vmatpush1.xpose.msra.mxu0 0.0
        %759 = vmatprep.subr.mxu0 0.0
        %760 = vmatpush1.xpose.msra.mxu0 0.0
        %761 = vmatprep.subr.mxu0 0.0
        %762 = vmatpush1.xpose.msra.mxu0 0.0
        %763 = vmatprep.subr.mxu0 0.0
        %764 = vmatpush1.xpose.msra.mxu0 0.0
        %765 = vmatprep.mubr.f32.mxu0 0.0
        %v766 = vand.u32 %v265, 4294901760
        %767 = vmatmul.mubr.f32.gmra.mrb[0].mxu0 %v766
        %v768 = vpop.f32.mrb[0].mxu0
        %v769 = vadd.f32 %v690, %v768
        %v770 = vpop.f32.mrb[0].mxu0
        %771 = vmatprep.mubr.f32.mxu0 0.0
        %v772 = vand.u32 %v268, 4294901760
        %773 = vmatmul.mubr.f32.gmra.mrb[0].mxu0 %v772
        %v774 = vpop.f32.mrb[0].mxu0
        %v775 = vadd.f32 %v696, %v774
        %v776 = vpop.f32.mrb[0].mxu0
        %777 = vdwg.mxu0
        %s778 = sld [smem:[#allocation2 + %s25]]
        %v779 = vstv %s778
        %v780 = vmin.f32 %v769, %v779
        %v781 = vmin.f32 %v775, %v779
        %v782 = vmul.f32 %v780, 1.442695
        %v783 = vpow.pop %v782
        %v784 = vmul.f32 %v781, 1.442695
        %v785 = vpow.pop %v784
        %vm786 = vcmask 130048
        %787 = vst.msk [vmem:[%s237] sm:$0xff] %vm786, %v783
        %788 = vst.msk [vmem:[%s237 + $0x8] sm:$0xff] %vm786, %v785
        %s789 = sand.u32 %s126, 1
        %s790 = scalar_lea.sflag [#allocation3], %s789
        %s791 = sand.u32 %s126, 1
        %s792 = smul.addr %s791, 16
        %s793 = scalar_lea.vmem [#allocation5], %s792
        // Predicated region
        $region37: #{tpu_custom_call.1} parent=31 // pred_check
          %p794 = pneg %p136
        $region38: #{tpu_custom_call.1} parent=31 // pred_check_branch
          %796 = sbr.rel (%p794) target = $region40
        $region39: #{tpu_custom_call.1} parent=31 // pred_region
          %s797 = smul.u32 2, %s24
          %s799 = ssub.s32 256, 256
          %800 = vsyncadd %s790, %s799
          %s801 = sadd.s32 %s23, %s797
          %s802 = smul.addr %s25, 2
          %s803 = sadd.s32 %s801, %s802
          %s804 = smul.addr %s803, 128
          %s805 = scalar_lea.hbm %s3, %s804
          %s806 = sshll.u32 %s793, 4
          %s807 = int_to_ptr.vmem [resolvable:$true] %s806
          %812 = dma.vmem_to_hbm [thread:$0]  %s807, 256, %s805, %s790, 128, 128, 8
        $region40: #{tpu_custom_call.1} parent=31 // pred_fallthru
          _
      $region32: #{tpu_custom_call.1} parent=5 // pred_fallthru
        _
      %p813 = scmp.le.s32.totalorder 2, %s13
      // Predicated region
      $region41: #{tpu_custom_call.1} parent=5 // pred_check
        %p814 = pneg %p813
      $region42: #{tpu_custom_call.1} parent=5 // pred_check_branch
        %816 = sbr.rel (%p814) target = $region44
      $region43: #{tpu_custom_call.1} parent=5 // pred_region
        %s817 = ssub.s32 %s13, 2
        // Predicated region
        $region45: #{tpu_custom_call.1} parent=43 // pred_check
          %p818 = pneg %p142
        $region46: #{tpu_custom_call.1} parent=43 // pred_check_branch
          %820 = sbr.rel (%p818) target = $region48
        $region47: #{tpu_custom_call.1} parent=43 // pred_region
          %s821 = sand.u32 %s127, 1
          %s822 = scalar_lea.sflag [#allocation3], %s821
          %s823 = sand.u32 %s127, 1
          %s824 = smul.addr %s823, 16
          %s825 = scalar_lea.vmem [#allocation5], %s824
          %826 = dma.done %s822, 256
        $region48: #{tpu_custom_call.1} parent=43 // pred_fallthru
          _
      $region44: #{tpu_custom_call.1} parent=5 // pred_fallthru
        _
    $region6: #{tpu_custom_call.1} parent=1 // loop_footer
      %s17 = sadd.s32 1, %s13
    $region7: #{tpu_custom_call.1} parent=1 // loop_footer_branch
      %12 = sbr.rel target = $region3
    $region8: #{tpu_custom_call.1} parent=1 // loop_exit
      _
    %827 = vsyncpa [#allocation3], 1
    %s828 = scalar_lea.sflag [#allocation3], 1
    %829 = vsyncpa %s828, 1
    %830 = vsyncpa [#allocation4], 1
    %s831 = scalar_lea.sflag [#allocation4], 1
    %832 = vsyncpa %s831, 1

</llo_original>
